<compile_context>
chip_gen: v6e
topology: v6e:2x2x1
jax: 0.10.0
libtpu: 0.0.40
codegen_flags: <defaults>
</compile_context>

<pallas_src>
import functools
import math

import jax
import jax.numpy as jnp
from jax import lax
from jax.experimental import pallas as pl
from jax.experimental.pallas import tpu as pltpu

# dot_general dimension numbers (2-D operands)
_NN = (((1,), (0,)), ((), ()))   # standard matmul:        A   @ B
_TN = (((0,), (0,)), ((), ()))   # transposed-LHS matmul:  A^T @ B (contraction on
                                 # dim 0; no explicit XLU transpose is materialized)


def _graph_linear_kernel(adj_ref, state_ref, w_in_ref, w_out_ref, w_loop_ref,
                         bias_ref, o_ref, *scratch,
                         activate, project_first, row_tiled, agg_bf16):
    f32 = jnp.float32
    agg_dt = jnp.bfloat16 if agg_bf16 else f32
    bt = adj_ref.shape[0]
    nr = adj_ref.shape[1]

    bias = bias_ref[...]            # (1, D_out_p), pre-summed, zero-padded
    w_in = w_in_ref[...]            # (D_in, D_out_p), zero-padded
    w_out = w_out_ref[...]
    w_loop = w_loop_ref[...]

    def leaky(y):
        return jnp.where(y > 0, y, 0.01 * y) if activate else y

    if row_tiled:
        # Large-N / v7x regime: bt == 1, grid axis 1 walks row tiles of adj.
        # adj_rows @ state lands directly in the matching accumulator rows;
        # the adj^T @ state partial sums are accumulated across the
        # ("arbitrary") row axis in an f32 VMEM scratch; the output is
        # written once on the last row step.
        acc_ref = scratch[0]                                   # (N, D_out_p) f32
        r = pl.program_id(1)
        row0 = pl.multiple_of(r * nr, nr)

        adj_r = adj_ref[0].astype(agg_dt)                      # (nr, N)
        st_full = state_ref[0]                                 # (N, D_in)
        st_agg = st_full.astype(agg_dt)
        st_rows = state_ref[0, pl.ds(row0, nr), :].astype(agg_dt)   # (nr, D_in)

        @pl.when(r == 0)
        def _():
            acc_ref[...] = (jnp.dot(st_full, w_loop, preferred_element_type=f32)
                            + bias)

        # rows [row0, row0+nr) of (adj @ state) @ W_in
        agg_in_rows = lax.dot_general(adj_r, st_agg, _NN,
                                      preferred_element_type=f32)     # (nr, D_in)
        cur = acc_ref[pl.ds(row0, nr), :]
        acc_ref[pl.ds(row0, nr), :] = cur + jnp.dot(
            agg_in_rows, w_in, preferred_element_type=f32)

        # partial (adj^T @ state) from these rows, contributes to ALL rows
        agg_out_part = lax.dot_general(adj_r, st_rows, _TN,
                                       preferred_element_type=f32)    # (N, D_in)
        acc_ref[...] = acc_ref[...] + jnp.dot(
            agg_out_part, w_out, preferred_element_type=f32)

        @pl.when(r == pl.num_programs(1) - 1)
        def _():
            o_ref[0] = leaky(acc_ref[...]).astype(o_ref.dtype)
    else:
        def per_graph(b):
            adj_b = adj_ref[b].astype(agg_dt)                  # (N, N)
            st_f = state_ref[b]                                # (N, D_in)
            acc = jnp.dot(st_f, w_loop, preferred_element_type=f32) + bias
            if project_first:
                # padded D_out < D_in: project first, run the O(N^2) dots on
                # the narrower features.
                p_in = jnp.dot(st_f, w_in,
                               preferred_element_type=f32).astype(agg_dt)
                p_out = jnp.dot(st_f, w_out,
                                preferred_element_type=f32).astype(agg_dt)
                acc = acc + lax.dot_general(adj_b, p_in, _NN,
                                            preferred_element_type=f32)
                acc = acc + lax.dot_general(adj_b, p_out, _TN,
                                            preferred_element_type=f32)
            else:
                st_agg = st_f.astype(agg_dt)
                agg_in = lax.dot_general(adj_b, st_agg, _NN,
                                         preferred_element_type=f32)
                agg_out = lax.dot_general(adj_b, st_agg, _TN,
                                          preferred_element_type=f32)
                acc = acc + jnp.dot(agg_in, w_in, preferred_element_type=f32)
                acc = acc + jnp.dot(agg_out, w_out, preferred_element_type=f32)
            o_ref[b] = leaky(acc).astype(o_ref.dtype)

        if bt == 1:
            per_graph(0)
        else:
            def body(b, carry):
                per_graph(b)
                return carry
            lax.fori_loop(0, bt, body, 0, unroll=True)


def _round_up(x, m):
    return ((x + m - 1) // m) * m


def _physical_vmem_bytes():
    try:
        return int(pltpu.get_tpu_info().vmem_capacity_bytes)
    except Exception:
        return 64 << 20          # conservative: v7x per-TensorCore VMEM


def _step_vmem_bytes(bt, nr, n, d_in, d_out_p, adj_isz, st_isz, out_isz,
                     agg_bf16, row_tiled):
    """Conservative per-grid-step VMEM estimate: double-buffered blocks +
    resident weights + accumulator scratch + one graph's live intermediates
    (the fori_loop bounds intermediates to a single graph)."""
    agg_isz = 2 if agg_bf16 else 4
    blocks = (2 * bt * nr * n * adj_isz          # adj block
              + 2 * bt * n * d_in * st_isz       # state block
              + 2 * bt * n * d_out_p * out_isz)  # out block
    weights = 2 * (3 * d_in * d_out_p + d_out_p) * 4
    scratch = n * d_out_p * 4 if row_tiled else 0
    live = (nr * n * agg_isz                     # adj cast
            + n * d_in * agg_isz                 # state cast
            + (n + nr) * max(d_in, d_out_p) * 4  # aggregations / projections
            + (n + nr) * d_out_p * 4             # weight-matmul partials
            + n * d_out_p * 4)                   # accumulator value
    return blocks + weights + scratch + live


def _choose_tiling(B, N, d_in, d_out_p, adj_isz, st_isz, out_isz, agg_bf16,
                   phys_vmem, batch_tile, row_tile):
    # sublane packing multiple for the adjacency block's second-minor dim
    subl = {4: 8, 2: 16, 1: 32}.get(adj_isz, 8)
    budget = max(8 << 20, min(phys_vmem - (16 << 20), 112 << 20))

    def fits(bt, nr):
        return _step_vmem_bytes(bt, nr, N, d_in, d_out_p, adj_isz, st_isz,
                                out_isz, agg_bf16, nr < N) <= budget

    if row_tile is not None and row_tile < N:
        if N % row_tile or row_tile % subl:
            raise ValueError(
                f"row_tile must divide N and be a multiple of {subl}")
        return 1, row_tile
    if batch_tile is not None:
        if B % batch_tile:
            raise ValueError("batch_tile must divide the batch size")
        return batch_tile, N

    # Keep >= min(B, 4) batch-grid steps: the pipeline needs work to prefetch
    # behind, and the "parallel" axis is what feeds both v7x TensorCores.
    max_bt = min(8, max(1, B // min(B, 4)))
    bt = 1
    for d in range(1, max_bt + 1):
        if B % d == 0 and fits(d, N):
            bt = d
    if fits(bt, N):
        return bt, N

    # Even a single full-N adj block misses the budget (v7x-sized VMEM or very
    # large N): row-tile the adjacency and accumulate across the row axis.
    if N % subl == 0:
        nr = (N // (2 * subl)) * subl
        while nr >= subl:
            if N % nr == 0 and fits(1, nr):
                return 1, nr
            nr -= subl
    # TODO(synk): N too large for even the smallest row tile (or N not a
    # multiple of the packing); fall back and rely on the raised VMEM limit.
    return 1, N


def graph_linear(adj_mat, state, params, activate=True, *,
                 adj_storage="float32", batch_tile=None, row_tile=None):
    """adj_mat: [B, N, N], state: [B, N, D_in] -> [B, N, D_out].

    adj_storage in {"float32", "bfloat16", "int8"}.  bf16/int8 are exact for
    {0,1} adjacency, shrink the dominant HBM stream and switch the
    aggregation matmuls to the MXU's fast bf16 path (accumulation stays f32).
    """
    B, N, _ = adj_mat.shape
    d_in = state.shape[-1]
    w_in, b_in, w_out, b_out, w_loop, b_loop = params   # W: [D_in, D_out]
    d_out = w_in.shape[1]
    d_out_p = _round_up(d_out, 128)        # lane-dense output (unmasked stores)
    pad = d_out_p - d_out
    f32 = jnp.float32

    def _pad_w(w):
        w = w.astype(f32)
        return jnp.pad(w, ((0, 0), (0, pad))) if pad else w

    w_in_p, w_out_p, w_loop_p = _pad_w(w_in), _pad_w(w_out), _pad_w(w_loop)
    bias = (b_in + b_out + b_loop).astype(f32).reshape(1, d_out)
    bias_p = jnp.pad(bias, ((0, 0), (0, pad))) if pad else bias

    if adj_storage == "bfloat16":
        adj = adj_mat.astype(jnp.bfloat16)
        agg_bf16 = True
    elif adj_storage == "int8":
        adj = adj_mat.astype(jnp.int8)
        agg_bf16 = True
    elif adj_storage == "float32":
        adj = adj_mat
        agg_bf16 = False
    else:
        raise ValueError(f"unknown adj_storage: {adj_storage!r}")

    adj_isz = jnp.dtype(adj.dtype).itemsize
    st_isz = jnp.dtype(state.dtype).itemsize
    out_isz = st_isz

    phys = _physical_vmem_bytes()
    bt, nr = _choose_tiling(B, N, d_in, d_out_p, adj_isz, st_isz, out_isz,
                            agg_bf16, phys, batch_tile, row_tile)
    row_tiled = nr < N
    if row_tiled:
        bt = 1                                   # one graph per step when row-tiling

    # project-first only pays off when the padded output is narrower than the
    # (128-rounded) input; in the row-tiled regime we always aggregate first.
    project_first = (not row_tiled) and (d_out_p < _round_up(d_in, 128))

    est = _step_vmem_bytes(bt, nr, N, d_in, d_out_p, adj_isz, st_isz, out_isz,
                           agg_bf16, row_tiled)
    # Always set the scoped-VMEM limit (v5e defaults to 16 MiB) and clamp it to
    # the physical capacity (64 MiB per TensorCore on v7x).
    vmem_limit = int(min(max(est + (8 << 20), 32 << 20), phys - (8 << 20)))

    kernel = functools.partial(_graph_linear_kernel, activate=activate,
                               project_first=project_first,
                               row_tiled=row_tiled, agg_bf16=agg_bf16)

    if row_tiled:
        grid = (B, N // nr)
        adj_spec = pl.BlockSpec((1, nr, N), lambda g, r: (g, r, 0))
        st_spec = pl.BlockSpec((1, N, d_in), lambda g, r: (g, 0, 0))
        w_spec = pl.BlockSpec((d_in, d_out_p), lambda g, r: (0, 0))
        b_spec = pl.BlockSpec((1, d_out_p), lambda g, r: (0, 0))
        out_spec = pl.BlockSpec((1, N, d_out_p), lambda g, r: (g, 0, 0))
        scratch = [pltpu.VMEM((N, d_out_p), f32)]
        dims = ("parallel", "arbitrary")
    else:
        grid = (B // bt,)
        adj_spec = pl.BlockSpec((bt, N, N), lambda g: (g, 0, 0))
        st_spec = pl.BlockSpec((bt, N, d_in), lambda g: (g, 0, 0))
        w_spec = pl.BlockSpec((d_in, d_out_p), lambda g: (0, 0))
        b_spec = pl.BlockSpec((1, d_out_p), lambda g: (0, 0))
        out_spec = pl.BlockSpec((bt, N, d_out_p), lambda g: (g, 0, 0))
        scratch = []
        dims = ("parallel",)

    out = pl.pallas_call(
        kernel,
        out_shape=jax.ShapeDtypeStruct((B, N, d_out_p), state.dtype),
        grid_spec=pltpu.PrefetchScalarGridSpec(
            num_scalar_prefetch=0,
            grid=grid,
            in_specs=[adj_spec, st_spec, w_spec, w_spec, w_spec, b_spec],
            out_specs=out_spec,
            scratch_shapes=scratch),
        compiler_params=pltpu.CompilerParams(
            dimension_semantics=dims,
            vmem_limit_bytes=vmem_limit),
    )(adj, state, w_in_p, w_out_p, w_loop_p, bias_p)

    return out[..., :d_out] if pad else out


# --------------------------------------------------------------------------
# reference + test harness
# --------------------------------------------------------------------------

def init_linear_params(key, in_size, out_size):
    """Deterministic init mimicking nn.Linear's uniform(-1/sqrt(in), 1/sqrt(in))."""
    kw, kb = jax.random.split(key)
    bound = 1.0 / math.sqrt(in_size)
    w = jax.random.uniform(kw, (in_size, out_size), jnp.float32, -bound, bound)
    b = jax.random.uniform(kb, (1, out_size), jnp.float32, -bound, bound)
    return w, b


def reference_graph_linear(adj_mat, state, params, activate=True):
    w_in, b_in, w_out, b_out, w_loop, b_loop = params
    hp = jax.lax.Precision.HIGHEST
    agg_in = jnp.matmul(adj_mat, state, precision=hp)
    agg_out = jnp.matmul(jnp.swapaxes(adj_mat, -2, -1), state, precision=hp)
    y = (jnp.matmul(agg_in, w_in, precision=hp) + b_in
         + jnp.matmul(agg_out, w_out, precision=hp) + b_out
         + jnp.matmul(state, w_loop, precision=hp) + b_loop)
    return jnp.where(y > 0, y, 0.01 * y) if activate else y


def _run_case(key, *, B, N, D_in, D_out, activate=True, adj_storage="float32",
              batch_tile=None, row_tile=None, atol=1e-4, rtol=1e-4):
    k_adj, k_state, k1, k2, k3 = jax.random.split(key, 5)
    adj_mat = (jax.random.uniform(k_adj, (B, N, N)) > 0.5).astype(jnp.float32)
    state = jax.random.normal(k_state, (B, N, D_in), jnp.float32)
    # quantize state to bf16-exact values so the bf16/int8 adjacency paths can
    # be checked tightly against the f32 reference
    state = jnp.clip(jnp.round(state * 32.0) / 32.0, -4.0, 4.0)
    params = (*init_linear_params(k1, D_in, D_out),
              *init_linear_params(k2, D_in, D_out),
              *init_linear_params(k3, D_in, D_out))

    out = jax.block_until_ready(graph_linear(
        adj_mat, state, params, activate=activate, adj_storage=adj_storage,
        batch_tile=batch_tile, row_tile=row_tile))
    ref = reference_graph_linear(adj_mat, state, params, activate=activate)
    assert out.shape == (B, N, D_out), out.shape
    err = jnp.max(jnp.abs(out - ref))
    assert jnp.allclose(out, ref, atol=atol, rtol=rtol), (
        f"mismatch vs reference (max abs err {err}) "
        f"N={N} D_in={D_in} D_out={D_out} storage={adj_storage} "
        f"batch_tile={batch_tile} row_tile={row_tile}")


if __name__ == "__main__":
    key = jax.random.PRNGKey(0)
    ks = jax.random.split(key, 7)

    # Aggregate-first, f32 adjacency, padded (non-128) D_out, grid of 2.
    _run_case(ks[0], B=2, N=8, D_in=16, D_out=32)
    # Batch-tiled path (bt=2 -> fori_loop over graphs), lane-native D_out=128.
    _run_case(ks[1], B=4, N=16, D_in=16, D_out=128, batch_tile=2)
    # Project-first path (padded D_out (128) < D_in (256)).
    _run_case(ks[2], B=2, N=8, D_in=256, D_out=64)
    # bf16 adjacency storage -> bf16 MXU aggregation, f32 accumulation.
    _run_case(ks[3], B=2, N=16, D_in=16, D_out=32, adj_storage="bfloat16",
              atol=1e-3, rtol=1e-3)
    # int8 adjacency storage (exact for 0/1 graphs), bf16 MXU aggregation.
    _run_case(ks[4], B=2, N=32, D_in=16, D_out=32, adj_storage="int8",
              atol=1e-3, rtol=1e-3)
    # Row-tiled (v7x / large-N) path: adj^T partial sums accumulated in VMEM.
    _run_case(ks[5], B=2, N=32, D_in=16, D_out=32, row_tile=8)
    # No-activation variant.
    _run_case(ks[6], B=2, N=8, D_in=16, D_out=32, activate=False)

    print("KERNEL_OK")
</pallas_src>

<mosaic_0001>
module attributes {stable_mosaic.version = 11 : i64} {
  func.func @_graph_linear_kernel(%arg0: i32, %arg1: memref<1x8x8xf32, #tpu.memory_space<vmem>>, %arg2: memref<1x8x16xf32, #tpu.memory_space<vmem>>, %arg3: memref<16x128xf32, #tpu.memory_space<vmem>>, %arg4: memref<16x128xf32, #tpu.memory_space<vmem>>, %arg5: memref<16x128xf32, #tpu.memory_space<vmem>>, %arg6: memref<1x128xf32, #tpu.memory_space<vmem>>, %arg7: memref<1x8x128xf32, #tpu.memory_space<vmem>>) attributes {dimension_semantics = [#tpu.dimension_semantics<parallel>], iteration_bounds = array<i64: 2>, scalar_prefetch = 0 : i64, scratch_operands = 0 : i64, tpu.core_type = #tpu.core_type<tc>, window_params = [{transform_indices = @transform_0, window_bounds = array<i64: 1, 8, 8>}, {transform_indices = @transform_1, window_bounds = array<i64: 1, 8, 16>}, {pipeline_mode = #tpu.pipeline_mode<synchronous>, transform_indices = @transform_2, window_bounds = array<i64: 16, 128>}, {pipeline_mode = #tpu.pipeline_mode<synchronous>, transform_indices = @transform_3, window_bounds = array<i64: 16, 128>}, {pipeline_mode = #tpu.pipeline_mode<synchronous>, transform_indices = @transform_4, window_bounds = array<i64: 16, 128>}, {pipeline_mode = #tpu.pipeline_mode<synchronous>, transform_indices = @transform_5, window_bounds = array<i64: 1, 128>}, {transform_indices = @transform_6, window_bounds = array<i64: 1, 8, 128>}]} {
    %c0 = arith.constant 0 : index
    %c0_0 = arith.constant 0 : index
    %0 = vector.load %arg6[%c0, %c0_0] : memref<1x128xf32, #tpu.memory_space<vmem>>, vector<1x128xf32>
    %c0_1 = arith.constant 0 : index
    %c0_2 = arith.constant 0 : index
    %1 = vector.load %arg3[%c0_1, %c0_2] : memref<16x128xf32, #tpu.memory_space<vmem>>, vector<16x128xf32>
    %c0_3 = arith.constant 0 : index
    %c0_4 = arith.constant 0 : index
    %2 = vector.load %arg4[%c0_3, %c0_4] : memref<16x128xf32, #tpu.memory_space<vmem>>, vector<16x128xf32>
    %c0_5 = arith.constant 0 : index
    %c0_6 = arith.constant 0 : index
    %3 = vector.load %arg5[%c0_5, %c0_6] : memref<16x128xf32, #tpu.memory_space<vmem>>, vector<16x128xf32>
    %c0_7 = arith.constant 0 : index
    %c0_8 = arith.constant 0 : index
    %c0_9 = arith.constant 0 : index
    %4 = vector.load %arg1[%c0_7, %c0_8, %c0_9] : memref<1x8x8xf32, #tpu.memory_space<vmem>>, vector<1x8x8xf32>
    %5 = vector.shape_cast %4 : vector<1x8x8xf32> to vector<8x8xf32>
    %c0_10 = arith.constant 0 : index
    %c0_11 = arith.constant 0 : index
    %c0_12 = arith.constant 0 : index
    %6 = vector.load %arg2[%c0_10, %c0_11, %c0_12] : memref<1x8x16xf32, #tpu.memory_space<vmem>>, vector<1x8x16xf32>
    %7 = vector.shape_cast %6 : vector<1x8x16xf32> to vector<8x16xf32>
    %cst = arith.constant dense<0.000000e+00> : vector<8x128xf32>
    %8 = tpu.matmul %7, %3, %cst {dimension_numbers = #tpu.dot_dimension_numbers<[1], [0], [0], [1], [0, 0, 1, 1], [], []>} : vector<8x16xf32>, vector<16x128xf32>, vector<8x128xf32> -> vector<8x128xf32>
    %9 = vector.broadcast %0 : vector<1x128xf32> to vector<8x128xf32>
    %10 = arith.addf %8, %9 : vector<8x128xf32>
    %cst_13 = arith.constant dense<0.000000e+00> : vector<8x16xf32>
    %11 = tpu.matmul %5, %7, %cst_13 {dimension_numbers = #tpu.dot_dimension_numbers<[1], [0], [0], [1], [0, 0, 1, 1], [], []>} : vector<8x8xf32>, vector<8x16xf32>, vector<8x16xf32> -> vector<8x16xf32>
    %cst_14 = arith.constant dense<0.000000e+00> : vector<8x16xf32>
    %12 = tpu.matmul %5, %7, %cst_14 {dimension_numbers = #tpu.dot_dimension_numbers<[0], [0], [1], [1], [0, 1, 1, 1], [], []>} : vector<8x8xf32>, vector<8x16xf32>, vector<8x16xf32> -> vector<8x16xf32>
    %cst_15 = arith.constant dense<0.000000e+00> : vector<8x128xf32>
    %13 = tpu.matmul %11, %1, %cst_15 {dimension_numbers = #tpu.dot_dimension_numbers<[1], [0], [0], [1], [0, 0, 1, 1], [], []>} : vector<8x16xf32>, vector<16x128xf32>, vector<8x128xf32> -> vector<8x128xf32>
    %14 = arith.addf %10, %13 : vector<8x128xf32>
    %cst_16 = arith.constant dense<0.000000e+00> : vector<8x128xf32>
    %15 = tpu.matmul %12, %2, %cst_16 {dimension_numbers = #tpu.dot_dimension_numbers<[1], [0], [0], [1], [0, 0, 1, 1], [], []>} : vector<8x16xf32>, vector<16x128xf32>, vector<8x128xf32> -> vector<8x128xf32>
    %16 = arith.addf %14, %15 : vector<8x128xf32>
    %cst_17 = arith.constant 0.000000e+00 : f32
    %17 = vector.broadcast %cst_17 : f32 to vector<8x128xf32>
    %18 = arith.cmpf ogt, %16, %17 : vector<8x128xf32>
    %cst_18 = arith.constant 0.00999999977 : f32
    %19 = vector.broadcast %cst_18 : f32 to vector<8x128xf32>
    %20 = arith.mulf %19, %16 : vector<8x128xf32>
    %21 = arith.select %18, %16, %20 : vector<8x128xi1>, vector<8x128xf32>
    %c0_19 = arith.constant 0 : index
    %c0_20 = arith.constant 0 : index
    %c0_21 = arith.constant 0 : index
    %22 = vector.load %arg7[%c0_19, %c0_20, %c0_21] : memref<1x8x128xf32, #tpu.memory_space<vmem>>, vector<1x8x128xf32>
    %23 = vector.shape_cast %22 : vector<1x8x128xf32> to vector<8x128xf32>
    %24 = vector.shape_cast %21 : vector<8x128xf32> to vector<1x8x128xf32>
    tpu.vector_store %arg7[%c0_19, %c0_20, %c0_21], %24 {strides = array<i32>} : memref<1x8x128xf32, #tpu.memory_space<vmem>>, vector<1x8x128xf32>,
    return
  }
  func.func @transform_0(%arg0: i32) -> (i32, i32, i32) {
    %c0_i32 = arith.constant 0 : i32
    %c0_i32_0 = arith.constant 0 : i32
    %c0_i32_1 = arith.constant 0 : i32
    return %arg0, %c0_i32, %c0_i32_0 : i32, i32, i32
  }
  func.func @transform_1(%arg0: i32) -> (i32, i32, i32) {
    %c0_i32 = arith.constant 0 : i32
    %c0_i32_0 = arith.constant 0 : i32
    %c0_i32_1 = arith.constant 0 : i32
    return %arg0, %c0_i32, %c0_i32_0 : i32, i32, i32
  }
  func.func @transform_2(%arg0: i32) -> (i32, i32) {
    %c0_i32 = arith.constant 0 : i32
    %c0_i32_0 = arith.constant 0 : i32
    %c0_i32_1 = arith.constant 0 : i32
    return %c0_i32, %c0_i32_0 : i32, i32
  }
  func.func @transform_3(%arg0: i32) -> (i32, i32) {
    %c0_i32 = arith.constant 0 : i32
    %c0_i32_0 = arith.constant 0 : i32
    %c0_i32_1 = arith.constant 0 : i32
    return %c0_i32, %c0_i32_0 : i32, i32
  }
  func.func @transform_4(%arg0: i32) -> (i32, i32) {
    %c0_i32 = arith.constant 0 : i32
    %c0_i32_0 = arith.constant 0 : i32
    %c0_i32_1 = arith.constant 0 : i32
    return %c0_i32, %c0_i32_0 : i32, i32
  }
  func.func @transform_5(%arg0: i32) -> (i32, i32) {
    %c0_i32 = arith.constant 0 : i32
    %c0_i32_0 = arith.constant 0 : i32
    %c0_i32_1 = arith.constant 0 : i32
    return %c0_i32, %c0_i32_0 : i32, i32
  }
  func.func @transform_6(%arg0: i32) -> (i32, i32, i32) {
    %c0_i32 = arith.constant 0 : i32
    %c0_i32_0 = arith.constant 0 : i32
    %c0_i32_1 = arith.constant 0 : i32
    return %arg0, %c0_i32, %c0_i32_0 : i32, i32, i32
  }
}

</mosaic_0001>

<llo_original>
// kernel: tpu_custom_call.1
$region0: #{tpu_custom_call.1}
  #allocation0 [shape = 'u32[]', space=smem, size = 0x4, offset = 0x4, fixed_abs, tag = 'smem constant byte address 0x4 - core index']
  #allocation1 [shape = 'u32[144,128]{1,0:T(1,128)}', space=vmem, size = 0x12000, scoped, tag = 'internal scratch']
  %s0 = inlined_call_operand.hbm [shape: f32[2,8,8], index: 0, kind: input, shape index: {}]
  %s1 = inlined_call_operand.hbm [shape: f32[2,8,16], index: 1, kind: input, shape index: {}]
  %s2 = inlined_call_operand.hbm [shape: f32[16,128], index: 2, kind: input, shape index: {}]
  %s3 = inlined_call_operand.hbm [shape: f32[16,128], index: 3, kind: input, shape index: {}]
  %s4 = inlined_call_operand.hbm [shape: f32[16,128], index: 4, kind: input, shape index: {}]
  %s5 = inlined_call_operand.vmem [shape: f32[1,128], index: 5, kind: input, shape index: {}]
  %s6 = inlined_call_operand.hbm [shape: f32[2,8,128], index: 6, kind: output, shape index: {}]
  %s7 = sld [smem:[#allocation0]]
  $region77: #{tpu_custom_call.1} parent=0
    _
  %s9 = ssub.s32 1, %s7
  %s10 = scalar_select 0, %s9, %s7
  $region1: #{tpu_custom_call.1} parent=0
    #allocation2 [shape = 'u8[8192]{0}', space=vmem, size = 0x2000, scoped, tag = 'input window, operand 0']
    #allocation3 [shape = 's32[2]{0}', space=sflag, size = 0x8, scoped, tag = 'scoped memory for tpu_custom_call.1']
    #allocation4 [shape = 's32[2]{0}', space=sflag, size = 0x8, scoped, tag = 'scoped memory for tpu_custom_call.1']
    #allocation5 [shape = 'u8[8192]{0}', space=vmem, size = 0x2000, scoped, tag = 'input window, operand 1']
    #allocation6 [shape = 's32[2]{0}', space=sflag, size = 0x8, scoped, tag = 'scoped memory for tpu_custom_call.1']
    #allocation7 [shape = 'u8[8192]{0}', space=vmem, size = 0x2000, scoped, tag = 'input window, operand 2, single buffered']
    #allocation8 [shape = 'u8[8192]{0}', space=vmem, size = 0x2000, scoped, tag = 'input window, operand 3, single buffered']
    #allocation9 [shape = 's32[1]{0}', space=sflag, size = 0x4, scoped, tag = 'scoped memory for tpu_custom_call.1']
    #allocation10 [shape = 'u8[8192]{0}', space=vmem, size = 0x2000, scoped, tag = 'input window, operand 4, single buffered']
    #allocation11 [shape = 'u8[8192]{0}', space=vmem, size = 0x2000, scoped, tag = 'output window, operand 0']
    %11 = vsyncpa [#allocation3], 0
    %s12 = scalar_lea.sflag [#allocation3], 1
    %13 = vsyncpa %s12, 0
    %14 = vsyncpa [#allocation6], 0
    %s15 = scalar_lea.sflag [#allocation6], 1
    %16 = vsyncpa %s15, 0
    %17 = vsyncpa [#allocation9], 0
    %18 = vsyncpa [#allocation4], 0
    %s19 = scalar_lea.sflag [#allocation4], 1
    %20 = vsyncpa %s19, 0
    loop: start=0, step=1, limit=4
    $region2: #{tpu_custom_call.1} parent=1 // loop_pre_header
      _
    $region3: #{tpu_custom_call.1} parent=1 // loop_header
      %s22 = sphi 0, %s26
      %p23 = scmp.ge.s32.totalorder %s22, 4
      %s32 = sphi 0, %s34
      %s35 = sphi 0, %s32
      %s36 = sphi 0, %s35
      %s52 = sphi 0, %s36
      %s58 = sphi 0, %s60
      %s61 = sphi 0, %s58
      %s62 = sphi 0, %s61
      %s78 = sphi 0, %s62
      %s82 = sphi 0, %s82
      %s84 = sphi 0, %s82
      %s85 = sphi 0, %s84
      %s99 = sphi 0, %s85
      %s103 = sphi 0, %s103
      %s105 = sphi 0, %s103
      %s106 = sphi 0, %s105
      %s120 = sphi 0, %s106
      %s124 = sphi 0, %s124
      %s126 = sphi 0, %s124
      %s127 = sphi 0, %s126
      %s141 = sphi 0, %s127
      %s145 = sphi 0, %s145
      %s147 = sphi 0, %s145
      %s148 = sphi 0, %s147
      %s162 = sphi 0, %s148
      %s168 = sphi 0, %s170
      %s171 = sphi 0, %s168
      %s172 = sphi 0, %s171
      %s188 = sphi 0, %s172
    $region4: #{tpu_custom_call.1} parent=1 // loop_header_branch
      %25 = sbr.rel (%p23) target = $region8
    $region5: #{tpu_custom_call.1} parent=1 // loop_body
      %s27 = ssub.s32 %s22, 1
      %s28 = ssub.s32 %s22, 2
      %s29 = sadd.s32 %s22, 1
      %s30 = ssub.s32 %s22, %s29
      %p31 = scmp.eq.s32.totalorder %s30, 0
      %s33 = sadd.s32 %s32, 1
      %s34 = scalar_select %p31, %s32, %s33
      %p37 = pneg %p31
      %p38 = scmp.eq.s32.totalorder %s22, 1
      %p39 = por %p37, %p38
      %p40 = scmp.ne.s32.totalorder %s32, %s35
      %p41 = scmp.eq.s32.totalorder %s22, 0
      %p42 = por %p40, %p41
      %p43 = scmp.ne.s32.totalorder %s32, %s35
      %p44 = scmp.eq.s32.totalorder %s27, 1
      %p45 = por %p43, %p44
      %p46 = scmp.ne.s32.totalorder %s35, %s36
      %p47 = scmp.eq.s32.totalorder %s27, 0
      %p48 = por %p46, %p47
      %p49 = scmp.ne.s32.totalorder %s35, %s36
      %p50 = scmp.eq.s32.totalorder %s28, 1
      %p51 = por %p49, %p50
      %p53 = scmp.ne.s32.totalorder %s36, %s52
      %p54 = scmp.eq.s32.totalorder %s28, 0
      %p55 = por %p53, %p54
      %s56 = ssub.s32 %s22, %s29
      %p57 = scmp.eq.s32.totalorder %s56, 0
      %s59 = sadd.s32 %s58, 1
      %s60 = scalar_select %p57, %s58, %s59
      %p63 = pneg %p57
      %p64 = scmp.eq.s32.totalorder %s22, 1
      %p65 = por %p63, %p64
      %p66 = scmp.ne.s32.totalorder %s58, %s61
      %p67 = scmp.eq.s32.totalorder %s22, 0
      %p68 = por %p66, %p67
      %p69 = scmp.ne.s32.totalorder %s58, %s61
      %p70 = scmp.eq.s32.totalorder %s27, 1
      %p71 = por %p69, %p70
      %p72 = scmp.ne.s32.totalorder %s61, %s62
      %p73 = scmp.eq.s32.totalorder %s27, 0
      %p74 = por %p72, %p73
      %p75 = scmp.ne.s32.totalorder %s61, %s62
      %p76 = scmp.eq.s32.totalorder %s28, 1
      %p77 = por %p75, %p76
      %p79 = scmp.ne.s32.totalorder %s62, %s78
      %p80 = scmp.eq.s32.totalorder %s28, 0
      %p81 = por %p79, %p80
      %s83 = sadd.s32 %s82, 1
      %p86 = scmp.eq.s32.totalorder %s22, 1
      %p87 = scmp.ne.s32.totalorder %s82, %s84
      %p88 = scmp.eq.s32.totalorder %s22, 0
      %p89 = por %p87, %p88
      %p90 = scmp.ne.s32.totalorder %s82, %s84
      %p91 = scmp.eq.s32.totalorder %s27, 1
      %p92 = por %p90, %p91
      %p93 = scmp.ne.s32.totalorder %s84, %s85
      %p94 = scmp.eq.s32.totalorder %s27, 0
      %p95 = por %p93, %p94
      %p96 = scmp.ne.s32.totalorder %s84, %s85
      %p97 = scmp.eq.s32.totalorder %s28, 1
      %p98 = por %p96, %p97
      %p100 = scmp.ne.s32.totalorder %s85, %s99
      %p101 = scmp.eq.s32.totalorder %s28, 0
      %p102 = por %p100, %p101
      %s104 = sadd.s32 %s103, 1
      %p107 = scmp.eq.s32.totalorder %s22, 1
      %p108 = scmp.ne.s32.totalorder %s103, %s105
      %p109 = scmp.eq.s32.totalorder %s22, 0
      %p110 = por %p108, %p109
      %p111 = scmp.ne.s32.totalorder %s103, %s105
      %p112 = scmp.eq.s32.totalorder %s27, 1
      %p113 = por %p111, %p112
      %p114 = scmp.ne.s32.totalorder %s105, %s106
      %p115 = scmp.eq.s32.totalorder %s27, 0
      %p116 = por %p114, %p115
      %p117 = scmp.ne.s32.totalorder %s105, %s106
      %p118 = scmp.eq.s32.totalorder %s28, 1
      %p119 = por %p117, %p118
      %p121 = scmp.ne.s32.totalorder %s106, %s120
      %p122 = scmp.eq.s32.totalorder %s28, 0
      %p123 = por %p121, %p122
      %s125 = sadd.s32 %s124, 1
      %p128 = scmp.eq.s32.totalorder %s22, 1
      %p129 = scmp.ne.s32.totalorder %s124, %s126
      %p130 = scmp.eq.s32.totalorder %s22, 0
      %p131 = por %p129, %p130
      %p132 = scmp.ne.s32.totalorder %s124, %s126
      %p133 = scmp.eq.s32.totalorder %s27, 1
      %p134 = por %p132, %p133
      %p135 = scmp.ne.s32.totalorder %s126, %s127
      %p136 = scmp.eq.s32.totalorder %s27, 0
      %p137 = por %p135, %p136
      %p138 = scmp.ne.s32.totalorder %s126, %s127
      %p139 = scmp.eq.s32.totalorder %s28, 1
      %p140 = por %p138, %p139
      %p142 = scmp.ne.s32.totalorder %s127, %s141
      %p143 = scmp.eq.s32.totalorder %s28, 0
      %p144 = por %p142, %p143
      %s146 = sadd.s32 %s145, 1
      %p149 = scmp.eq.s32.totalorder %s22, 1
      %p150 = scmp.ne.s32.totalorder %s145, %s147
      %p151 = scmp.eq.s32.totalorder %s22, 0
      %p152 = por %p150, %p151
      %p153 = scmp.ne.s32.totalorder %s145, %s147
      %p154 = scmp.eq.s32.totalorder %s27, 1
      %p155 = por %p153, %p154
      %p156 = scmp.ne.s32.totalorder %s147, %s148
      %p157 = scmp.eq.s32.totalorder %s27, 0
      %p158 = por %p156, %p157
      %p159 = scmp.ne.s32.totalorder %s147, %s148
      %p160 = scmp.eq.s32.totalorder %s28, 1
      %p161 = por %p159, %p160
      %p163 = scmp.ne.s32.totalorder %s148, %s162
      %p164 = scmp.eq.s32.totalorder %s28, 0
      %p165 = por %p163, %p164
      %s166 = ssub.s32 %s22, %s29
      %p167 = scmp.eq.s32.totalorder %s166, 0
      %s169 = sadd.s32 %s168, 1
      %s170 = scalar_select %p167, %s168, %s169
      %p173 = pneg %p167
      %p174 = scmp.eq.s32.totalorder %s22, 1
      %p175 = por %p173, %p174
      %p176 = scmp.ne.s32.totalorder %s168, %s171
      %p177 = scmp.eq.s32.totalorder %s22, 0
      %p178 = por %p176, %p177
      %p179 = scmp.ne.s32.totalorder %s168, %s171
      %p180 = scmp.eq.s32.totalorder %s27, 1
      %p181 = por %p179, %p180
      %p182 = scmp.ne.s32.totalorder %s171, %s172
      %p183 = scmp.eq.s32.totalorder %s27, 0
      %p184 = por %p182, %p183
      %p185 = scmp.ne.s32.totalorder %s171, %s172
      %p186 = scmp.eq.s32.totalorder %s28, 1
      %p187 = por %p185, %p186
      %p189 = scmp.ne.s32.totalorder %s172, %s188
      %p190 = scmp.eq.s32.totalorder %s28, 0
      %p191 = por %p189, %p190
      %p192 = scmp.le.s32.totalorder 1, %s22
      %p193 = scmp.lt.s32.totalorder %s22, 3
      %p194 = pnand %p192, %p193
      %p195 = pneg %p194
      // Predicated region
      $region9: #{tpu_custom_call.1} parent=5 // pred_check
        _
      $region10: #{tpu_custom_call.1} parent=5 // pred_check_branch
        %197 = sbr.rel (%p194) target = $region12
      $region11: #{tpu_custom_call.1} parent=5 // pred_region
        %s198 = ssub.s32 %s22, 1
        // Predicated region
        $region13: #{tpu_custom_call.1} parent=11 // pred_check
          %p199 = pneg %p95
        $region14: #{tpu_custom_call.1} parent=11 // pred_check_branch
          %201 = sbr.rel (%p199) target = $region16
        $region15: #{tpu_custom_call.1} parent=11 // pred_region
          %s203 = ssub.s32 256, 256
          %204 = vsyncadd [#allocation6], %s203
          %s205 = sshll.u32 [#allocation7], 4
          %s206 = int_to_ptr.vmem [resolvable:$true] %s205
          %211 = dma.hbm_to_vmem [thread:$0]  %s2, 256, %s206, [#allocation6], 128, 128, 8
        $region16: #{tpu_custom_call.1} parent=11 // pred_fallthru
          _
        // Predicated region
        $region17: #{tpu_custom_call.1} parent=11 // pred_check
          %p212 = pneg %p116
        $region18: #{tpu_custom_call.1} parent=11 // pred_check_branch
          %214 = sbr.rel (%p212) target = $region20
        $region19: #{tpu_custom_call.1} parent=11 // pred_region
          %s216 = ssub.s32 256, 256
          %217 = vsyncadd [#allocation9], %s216
          %s218 = sshll.u32 [#allocation8], 4
          %s219 = int_to_ptr.vmem [resolvable:$true] %s218
          %224 = dma.hbm_to_vmem [thread:$0]  %s3, 256, %s219, [#allocation9], 128, 128, 8
        $region20: #{tpu_custom_call.1} parent=11 // pred_fallthru
          _
        // Predicated region
        $region21: #{tpu_custom_call.1} parent=11 // pred_check
          %p225 = pneg %p137
        $region22: #{tpu_custom_call.1} parent=11 // pred_check_branch
          %227 = sbr.rel (%p225) target = $region24
        $region23: #{tpu_custom_call.1} parent=11 // pred_region
          %s229 = ssub.s32 256, 256
          %230 = vsyncadd [#allocation9], %s229
          %s231 = sshll.u32 [#allocation10], 4
          %s232 = int_to_ptr.vmem [resolvable:$true] %s231
          %237 = dma.hbm_to_vmem [thread:$0]  %s4, 256, %s232, [#allocation9], 128, 128, 8
        $region24: #{tpu_custom_call.1} parent=11 // pred_fallthru
          _
        // Predicated region
        $region25: #{tpu_custom_call.1} parent=11 // pred_check
          %p238 = pneg %p158
        $region26: #{tpu_custom_call.1} parent=11 // pred_check_branch
          %240 = sbr.rel (%p238) target = $region28
        $region27: #{tpu_custom_call.1} parent=11 // pred_region
          _
        $region28: #{tpu_custom_call.1} parent=11 // pred_fallthru
          _
      $region12: #{tpu_custom_call.1} parent=5 // pred_fallthru
        _
      %p241 = scmp.lt.s32.totalorder %s22, 2
      // Predicated region
      $region29: #{tpu_custom_call.1} parent=5 // pred_check
        %p242 = pneg %p241
      $region30: #{tpu_custom_call.1} parent=5 // pred_check_branch
        %244 = sbr.rel (%p242) target = $region32
      $region31: #{tpu_custom_call.1} parent=5 // pred_region
        // Predicated region
        $region33: #{tpu_custom_call.1} parent=31 // pred_check
          %p245 = pneg %p42
        $region34: #{tpu_custom_call.1} parent=31 // pred_check_branch
          %247 = sbr.rel (%p245) target = $region36
        $region35: #{tpu_custom_call.1} parent=31 // pred_region
          %s248 = sand.u32 %s32, 1
          %s249 = scalar_lea.sflag [#allocation3], %s248
          %s250 = sand.u32 %s32, 1
          %s251 = smul.addr %s250, 8
          %s252 = scalar_lea.vmem [#allocation2], %s251
          %s254 = ssub.s32 128, 128
          %255 = vsyncadd %s249, %s254
          %s256 = smul.addr %s22, 128
          %s257 = scalar_lea.hbm %s0, %s256
          %s259 = sshll.u32 %s252, 4
          %s260 = int_to_ptr.vmem [resolvable:$true] %s259
          %262 = dma.hbm_to_vmem [thread:$0]  %s257, 128, %s260, %s249
        $region36: #{tpu_custom_call.1} parent=31 // pred_fallthru
          _
        // Predicated region
        $region37: #{tpu_custom_call.1} parent=31 // pred_check
          %p263 = pneg %p68
        $region38: #{tpu_custom_call.1} parent=31 // pred_check_branch
          %265 = sbr.rel (%p263) target = $region40
        $region39: #{tpu_custom_call.1} parent=31 // pred_region
          %s266 = sand.u32 %s22, 1
          %s267 = scalar_lea.sflag [#allocation6], %s266
          %s268 = sand.u32 %s58, 1
          %s269 = smul.addr %s268, 8
          %s270 = scalar_lea.vmem [#allocation5], %s269
          %s272 = ssub.s32 128, 128
          %273 = vsyncadd %s267, %s272
          %s274 = smul.addr %s22, 128
          %s275 = scalar_lea.hbm %s1, %s274
          %s277 = sshll.u32 %s270, 4
          %s278 = int_to_ptr.vmem [resolvable:$true] %s277
          %280 = dma.hbm_to_vmem [thread:$0]  %s275, 128, %s278, %s267
        $region40: #{tpu_custom_call.1} parent=31 // pred_fallthru
          _
      $region32: #{tpu_custom_call.1} parent=5 // pred_fallthru
        _
      %p281 = scmp.le.s32.totalorder 1, %s22
      %p282 = scmp.lt.s32.totalorder %s22, 3
      %p283 = pnand %p281, %p282
      %p284 = pneg %p283
      // Predicated region
      $region41: #{tpu_custom_call.1} parent=5 // pred_check
        _
      $region42: #{tpu_custom_call.1} parent=5 // pred_check_branch
        %286 = sbr.rel (%p283) target = $region44
      $region43: #{tpu_custom_call.1} parent=5 // pred_region
        %s287 = ssub.s32 %s22, 1
        %s288 = sand.u32 %s35, 1
        %s289 = scalar_lea.sflag [#allocation3], %s288
        %s290 = sand.u32 %s35, 1
        %s291 = smul.addr %s290, 8
        %s292 = scalar_lea.vmem [#allocation2], %s291
        // Predicated region
        $region45: #{tpu_custom_call.1} parent=43 // pred_check
          %p293 = pneg %p48
        $region46: #{tpu_custom_call.1} parent=43 // pred_check_branch
          %295 = sbr.rel (%p293) target = $region48
        $region47: #{tpu_custom_call.1} parent=43 // pred_region
          %296 = dma.done %s289, 128
        $region48: #{tpu_custom_call.1} parent=43 // pred_fallthru
          _
        %s297 = sand.u32 %s27, 1
        %s298 = scalar_lea.sflag [#allocation6], %s297
        %s299 = sand.u32 %s61, 1
        %s300 = smul.addr %s299, 8
        %s301 = scalar_lea.vmem [#allocation5], %s300
        // Predicated region
        $region49: #{tpu_custom_call.1} parent=43 // pred_check
          %p302 = pneg %p74
        $region50: #{tpu_custom_call.1} parent=43 // pred_check_branch
          %304 = sbr.rel (%p302) target = $region52
        $region51: #{tpu_custom_call.1} parent=43 // pred_region
          %305 = dma.done %s298, 128
        $region52: #{tpu_custom_call.1} parent=43 // pred_fallthru
          _
        // Predicated region
        $region53: #{tpu_custom_call.1} parent=43 // pred_check
          %p306 = pneg %p95
        $region54: #{tpu_custom_call.1} parent=43 // pred_check_branch
          %308 = sbr.rel (%p306) target = $region56
        $region55: #{tpu_custom_call.1} parent=43 // pred_region
          %309 = dma.done [#allocation6], 256
        $region56: #{tpu_custom_call.1} parent=43 // pred_fallthru
          _
        // Predicated region
        $region57: #{tpu_custom_call.1} parent=43 // pred_check
          %p310 = pneg %p116
        $region58: #{tpu_custom_call.1} parent=43 // pred_check_branch
          %312 = sbr.rel (%p310) target = $region60
        $region59: #{tpu_custom_call.1} parent=43 // pred_region
          %313 = dma.done [#allocation9], 256
        $region60: #{tpu_custom_call.1} parent=43 // pred_fallthru
          _
        // Predicated region
        $region61: #{tpu_custom_call.1} parent=43 // pred_check
          %p314 = pneg %p137
        $region62: #{tpu_custom_call.1} parent=43 // pred_check_branch
          %316 = sbr.rel (%p314) target = $region64
        $region63: #{tpu_custom_call.1} parent=43 // pred_region
          %317 = dma.done [#allocation9], 256
        $region64: #{tpu_custom_call.1} parent=43 // pred_fallthru
          _
        %s318 = sand.u32 %s35, 1
        %s319 = scalar_lea.sflag [#allocation3], %s318
        %s320 = sand.u32 %s35, 1
        %s321 = smul.addr %s320, 8
        %s322 = scalar_lea.vmem [#allocation2], %s321
        %p323 = pneg %p48
        %p324 = pneg %p45
        %s325 = sand.u32 %s27, 1
        %s326 = scalar_lea.sflag [#allocation6], %s325
        %s327 = sand.u32 %s61, 1
        %s328 = smul.addr %s327, 8
        %s329 = scalar_lea.vmem [#allocation5], %s328
        %p330 = pneg %p74
        %p331 = pneg %p71
        %p332 = pneg %p95
        %p333 = pneg %p92
        %p334 = pneg %p116
        %p335 = pneg %p113
        %p336 = pneg %p137
        %p337 = pneg %p134
        %p338 = pneg %p158
        %p339 = pneg %p155
        %p340 = pneg %p184
        %p341 = pneg %p181
        %s342 = sand.u32 %s171, 1
        %s343 = scalar_lea.sflag [#allocation4], %s342
        %s344 = sand.u32 %s171, 1
        %s345 = smul.addr %s344, 8
        %s346 = scalar_lea.vmem [#allocation11], %s345
        %v347 = vld [vmem:[%s5] sm:$0x1]
        %v348 = vld [vmem:[#allocation7] sm:$0xff]
        %v349 = vld [vmem:[#allocation7 + $0x8] sm:$0xff]
        %v350 = vld [vmem:[#allocation8] sm:$0xff]
        %v351 = vld [vmem:[#allocation8 + $0x8] sm:$0xff]
        %v352 = vld [vmem:[#allocation10] sm:$0xff]
        %v353 = vld [vmem:[#allocation10 + $0x8] sm:$0xff]
        %v354 = vld [vmem:[%s292] sm:$0xff]
        %v355 = vld [vmem:[%s301] sm:$0xff]
        %v357 = vlaneseq
        %v358 = vshrl.u32 %v357, 7
        %v359 = vsub.s32 0, %v358
        %v360 = vrot.slane %v347, %v359
        %vm362 = vcmask 130048
        %v364 = vsel %vm362, %v355, 0
        %366 = vmatprep.subr.mxu0 0.0
        %367 = vmatpush1.msra.mxu0 0.0
        %368 = vmatprep.subr.mxu0 0.0
        %369 = vmatpush1.msra.mxu0 0.0
        %370 = vmatprep.subr.mxu0 0.0
        %371 = vmatpush1.msra.mxu0 0.0
        %372 = vmatprep.subr.mxu0 0.0
        %373 = vmatpush1.msra.mxu0 0.0
        %374 = vmatprep.subr.mxu0 0.0
        %375 = vmatpush1.msra.mxu0 0.0
        %376 = vmatprep.subr.mxu0 0.0
        %377 = vmatpush1.msra.mxu0 0.0
        %378 = vmatprep.subr.mxu0 0.0
        %379 = vmatpush1.msra.mxu0 0.0
        %380 = vmatprep.subr.mxu0 0.0
        %381 = vmatpush1.msra.mxu0 0.0
        %382 = vmatprep.subr.mxu0 0.0
        %383 = vmatpush1.msra.mxu0 0.0
        %384 = vmatprep.subr.mxu0 0.0
        %385 = vmatpush1.msra.mxu0 0.0
        %386 = vmatprep.subr.mxu0 0.0
        %387 = vmatpush1.msra.mxu0 0.0
        %388 = vmatprep.subr.mxu0 0.0
        %389 = vmatpush1.msra.mxu0 0.0
        %390 = vmatprep.subr.mxu0 0.0
        %391 = vmatpush1.msra.mxu0 0.0
        %392 = vmatprep.subr.mxu0 0.0
        %393 = vmatpush1.msra.mxu0 0.0
        %394 = vmatprep.subr.mxu0 0.0
        %395 = vmatpush1.msra.mxu0 %v353
        %396 = vmatprep.subr.mxu0 0.0
        %397 = vmatpush1.msra.mxu0 %v352
        %398 = vmatprep.subr.mxu0 0.0
        %399 = vmatpush2.msra.mxu0 0.0
        %400 = vmatprep.subr.mxu0 0.0
        %401 = vmatpush2.msra.mxu0 0.0
        %402 = vmatprep.subr.mxu0 0.0
        %403 = vmatpush2.msra.mxu0 0.0
        %404 = vmatprep.subr.mxu0 0.0
        %405 = vmatpush2.msra.mxu0 0.0
        %406 = vmatprep.subr.mxu0 0.0
        %407 = vmatpush2.msra.mxu0 0.0
        %408 = vmatprep.subr.mxu0 0.0
        %409 = vmatpush2.msra.mxu0 0.0
        %410 = vmatprep.subr.mxu0 0.0
        %411 = vmatpush2.msra.mxu0 0.0
        %412 = vmatprep.subr.mxu0 0.0
        %413 = vmatpush2.msra.mxu0 0.0
        %414 = vmatprep.subr.mxu0 0.0
        %415 = vmatpush2.msra.mxu0 0.0
        %416 = vmatprep.subr.mxu0 0.0
        %417 = vmatpush2.msra.mxu0 0.0
        %418 = vmatprep.subr.mxu0 0.0
        %419 = vmatpush2.msra.mxu0 0.0
        %420 = vmatprep.subr.mxu0 0.0
        %421 = vmatpush2.msra.mxu0 0.0
        %422 = vmatprep.subr.mxu0 0.0
        %423 = vmatpush2.msra.mxu0 0.0
        %424 = vmatprep.subr.mxu0 0.0
        %425 = vmatpush2.msra.mxu0 0.0
        %426 = vmatprep.subr.mxu0 0.0
        %427 = vmatpush2.msra.mxu0 0.0
        %428 = vmatprep.subr.mxu0 0.0
        %429 = vmatpush2.msra.mxu0 0.0
        %430 = vmatprep.mubr.f32.mxu0 0.0
        %431 = vmatmul.mubr.f32.gmra.mxu0 %v364
        %v432 = vpop.f32.mrf.mxu0
        %v433 = vadd.f32 %v360, %v432
        %v434 = vpop.f32.mrf.mxu0
        %435 = vdwg.mxu0
        %vm436 = vcmask 64512
        %v438 = vsel %vm436, %v354, 0
        %440 = vmatprep.subr.mxu0 0.0
        %441 = vmatpush1.msra.mxu0 0.0
        %442 = vmatprep.subr.mxu0 0.0
        %443 = vmatpush1.msra.mxu0 0.0
        %444 = vmatprep.subr.mxu0 0.0
        %445 = vmatpush1.msra.mxu0 0.0
        %446 = vmatprep.subr.mxu0 0.0
        %447 = vmatpush1.msra.mxu0 0.0
        %448 = vmatprep.subr.mxu0 0.0
        %449 = vmatpush1.msra.mxu0 0.0
        %450 = vmatprep.subr.mxu0 0.0
        %451 = vmatpush1.msra.mxu0 0.0
        %452 = vmatprep.subr.mxu0 0.0
        %453 = vmatpush1.msra.mxu0 0.0
        %454 = vmatprep.subr.mxu0 0.0
        %455 = vmatpush1.msra.mxu0 0.0
        %456 = vmatprep.subr.mxu0 0.0
        %457 = vmatpush1.msra.mxu0 0.0
        %458 = vmatprep.subr.mxu0 0.0
        %459 = vmatpush1.msra.mxu0 0.0
        %460 = vmatprep.subr.mxu0 0.0
        %461 = vmatpush1.msra.mxu0 0.0
        %462 = vmatprep.subr.mxu0 0.0
        %463 = vmatpush1.msra.mxu0 0.0
        %464 = vmatprep.subr.mxu0 0.0
        %465 = vmatpush1.msra.mxu0 0.0
        %466 = vmatprep.subr.mxu0 0.0
        %467 = vmatpush1.msra.mxu0 0.0
        %468 = vmatprep.subr.mxu0 0.0
        %469 = vmatpush1.msra.mxu0 0.0
        %470 = vmatprep.subr.mxu0 0.0
        %471 = vmatpush1.msra.mxu0 %v355
        %472 = vmatprep.subr.mxu0 0.0
        %473 = vmatpush2.msra.mxu0 0.0
        %474 = vmatprep.subr.mxu0 0.0
        %475 = vmatpush2.msra.mxu0 0.0
        %476 = vmatprep.subr.mxu0 0.0
        %477 = vmatpush2.msra.mxu0 0.0
        %478 = vmatprep.subr.mxu0 0.0
        %479 = vmatpush2.msra.mxu0 0.0
        %480 = vmatprep.subr.mxu0 0.0
        %481 = vmatpush2.msra.mxu0 0.0
        %482 = vmatprep.subr.mxu0 0.0
        %483 = vmatpush2.msra.mxu0 0.0
        %484 = vmatprep.subr.mxu0 0.0
        %485 = vmatpush2.msra.mxu0 0.0
        %486 = vmatprep.subr.mxu0 0.0
        %487 = vmatpush2.msra.mxu0 0.0
        %488 = vmatprep.subr.mxu0 0.0
        %489 = vmatpush2.msra.mxu0 0.0
        %490 = vmatprep.subr.mxu0 0.0
        %491 = vmatpush2.msra.mxu0 0.0
        %492 = vmatprep.subr.mxu0 0.0
        %493 = vmatpush2.msra.mxu0 0.0
        %494 = vmatprep.subr.mxu0 0.0
        %495 = vmatpush2.msra.mxu0 0.0
        %496 = vmatprep.subr.mxu0 0.0
        %497 = vmatpush2.msra.mxu0 0.0
        %498 = vmatprep.subr.mxu0 0.0
        %499 = vmatpush2.msra.mxu0 0.0
        %500 = vmatprep.subr.mxu0 0.0
        %501 = vmatpush2.msra.mxu0 0.0
        %502 = vmatprep.subr.mxu0 0.0
        %503 = vmatpush2.msra.mxu0 0.0
        %504 = vmatprep.mubr.f32.mxu0 0.0
        %505 = vmatmul.mubr.f32.gmra.mxu0 %v438
        %v506 = vpop.f32.mrf.mxu0
        %v507 = vadd.f32 0.0, %v506
        %v508 = vpop.f32.mrf.mxu0
        %509 = vdwg.mxu0
        %510 = vxpose.xlu0.b32.start [1/16] %v354, 128
        %511 = vxpose.xlu0.b32.cont [2/16] 0.0, 128
        %512 = vxpose.xlu0.b32.cont [3/16] 0.0, 128
        %513 = vxpose.xlu0.b32.cont [4/16] 0.0, 128
        %514 = vxpose.xlu0.b32.cont [5/16] 0.0, 128
        %515 = vxpose.xlu0.b32.cont [6/16] 0.0, 128
        %516 = vxpose.xlu0.b32.cont [7/16] 0.0, 128
        %517 = vxpose.xlu0.b32.cont [8/16] 0.0, 128
        %518 = vxpose.xlu0.b32.cont [9/16] 0.0, 128
        %519 = vxpose.xlu0.b32.cont [10/16] 0.0, 128
        %520 = vxpose.xlu0.b32.cont [11/16] 0.0, 128
        %521 = vxpose.xlu0.b32.cont [12/16] 0.0, 128
        %522 = vxpose.xlu0.b32.cont [13/16] 0.0, 128
        %523 = vxpose.xlu0.b32.cont [14/16] 0.0, 128
        %524 = vxpose.xlu0.b32.cont [15/16] 0.0, 128
        %525 = vxpose.xlu0.b32.end [16/16] 0.0, 128
        %v526 = vpop.trf.xlu0
        %v527 = vpop.trf.xlu0
        %v528 = vpop.trf.xlu0
        %v529 = vpop.trf.xlu0
        %v530 = vpop.trf.xlu0
        %v531 = vpop.trf.xlu0
        %v532 = vpop.trf.xlu0
        %v533 = vpop.trf.xlu0
        %v534 = vpop.trf.xlu0
        %v535 = vpop.trf.xlu0
        %v536 = vpop.trf.xlu0
        %v537 = vpop.trf.xlu0
        %v538 = vpop.trf.xlu0
        %v539 = vpop.trf.xlu0
        %v540 = vpop.trf.xlu0
        %v541 = vpop.trf.xlu0
        %v543 = vsel %vm436, %v526, 0
        %545 = vmatprep.subr.mxu0 0.0
        %546 = vmatpush1.msra.mxu0 0.0
        %547 = vmatprep.subr.mxu0 0.0
        %548 = vmatpush1.msra.mxu0 0.0
        %549 = vmatprep.subr.mxu0 0.0
        %550 = vmatpush1.msra.mxu0 0.0
        %551 = vmatprep.subr.mxu0 0.0
        %552 = vmatpush1.msra.mxu0 0.0
        %553 = vmatprep.subr.mxu0 0.0
        %554 = vmatpush1.msra.mxu0 0.0
        %555 = vmatprep.subr.mxu0 0.0
        %556 = vmatpush1.msra.mxu0 0.0
        %557 = vmatprep.subr.mxu0 0.0
        %558 = vmatpush1.msra.mxu0 0.0
        %559 = vmatprep.subr.mxu0 0.0
        %560 = vmatpush1.msra.mxu0 0.0
        %561 = vmatprep.subr.mxu0 0.0
        %562 = vmatpush1.msra.mxu0 0.0
        %563 = vmatprep.subr.mxu0 0.0
        %564 = vmatpush1.msra.mxu0 0.0
        %565 = vmatprep.subr.mxu0 0.0
        %566 = vmatpush1.msra.mxu0 0.0
        %567 = vmatprep.subr.mxu0 0.0
        %568 = vmatpush1.msra.mxu0 0.0
        %569 = vmatprep.subr.mxu0 0.0
        %570 = vmatpush1.msra.mxu0 0.0
        %571 = vmatprep.subr.mxu0 0.0
        %572 = vmatpush1.msra.mxu0 0.0
        %573 = vmatprep.subr.mxu0 0.0
        %574 = vmatpush1.msra.mxu0 0.0
        %575 = vmatprep.subr.mxu0 0.0
        %576 = vmatpush1.msra.mxu0 %v355
        %577 = vmatprep.subr.mxu0 0.0
        %578 = vmatpush2.msra.mxu0 0.0
        %579 = vmatprep.subr.mxu0 0.0
        %580 = vmatpush2.msra.mxu0 0.0
        %581 = vmatprep.subr.mxu0 0.0
        %582 = vmatpush2.msra.mxu0 0.0
        %583 = vmatprep.subr.mxu0 0.0
        %584 = vmatpush2.msra.mxu0 0.0
        %585 = vmatprep.subr.mxu0 0.0
        %586 = vmatpush2.msra.mxu0 0.0
        %587 = vmatprep.subr.mxu0 0.0
        %588 = vmatpush2.msra.mxu0 0.0
        %589 = vmatprep.subr.mxu0 0.0
        %590 = vmatpush2.msra.mxu0 0.0
        %591 = vmatprep.subr.mxu0 0.0
        %592 = vmatpush2.msra.mxu0 0.0
        %593 = vmatprep.subr.mxu0 0.0
        %594 = vmatpush2.msra.mxu0 0.0
        %595 = vmatprep.subr.mxu0 0.0
        %596 = vmatpush2.msra.mxu0 0.0
        %597 = vmatprep.subr.mxu0 0.0
        %598 = vmatpush2.msra.mxu0 0.0
        %599 = vmatprep.subr.mxu0 0.0
        %600 = vmatpush2.msra.mxu0 0.0
        %601 = vmatprep.subr.mxu0 0.0
        %602 = vmatpush2.msra.mxu0 0.0
        %603 = vmatprep.subr.mxu0 0.0
        %604 = vmatpush2.msra.mxu0 0.0
        %605 = vmatprep.subr.mxu0 0.0
        %606 = vmatpush2.msra.mxu0 0.0
        %607 = vmatprep.subr.mxu0 0.0
        %608 = vmatpush2.msra.mxu0 0.0
        %609 = vmatprep.mubr.f32.mxu0 0.0
        %610 = vmatmul.mubr.f32.gmra.mxu0 %v543
        %v611 = vpop.f32.mrf.mxu0
        %v612 = vadd.f32 0.0, %v611
        %v613 = vpop.f32.mrf.mxu0
        %614 = vdwg.mxu0
        %v616 = vsel %vm362, %v507, 0
        %618 = vmatprep.subr.mxu0 0.0
        %619 = vmatpush1.msra.mxu0 0.0
        %620 = vmatprep.subr.mxu0 0.0
        %621 = vmatpush1.msra.mxu0 0.0
        %622 = vmatprep.subr.mxu0 0.0
        %623 = vmatpush1.msra.mxu0 0.0
        %624 = vmatprep.subr.mxu0 0.0
        %625 = vmatpush1.msra.mxu0 0.0
        %626 = vmatprep.subr.mxu0 0.0
        %627 = vmatpush1.msra.mxu0 0.0
        %628 = vmatprep.subr.mxu0 0.0
        %629 = vmatpush1.msra.mxu0 0.0
        %630 = vmatprep.subr.mxu0 0.0
        %631 = vmatpush1.msra.mxu0 0.0
        %632 = vmatprep.subr.mxu0 0.0
        %633 = vmatpush1.msra.mxu0 0.0
        %634 = vmatprep.subr.mxu0 0.0
        %635 = vmatpush1.msra.mxu0 0.0
        %636 = vmatprep.subr.mxu0 0.0
        %637 = vmatpush1.msra.mxu0 0.0
        %638 = vmatprep.subr.mxu0 0.0
        %639 = vmatpush1.msra.mxu0 0.0
        %640 = vmatprep.subr.mxu0 0.0
        %641 = vmatpush1.msra.mxu0 0.0
        %642 = vmatprep.subr.mxu0 0.0
        %643 = vmatpush1.msra.mxu0 0.0
        %644 = vmatprep.subr.mxu0 0.0
        %645 = vmatpush1.msra.mxu0 0.0
        %646 = vmatprep.subr.mxu0 0.0
        %647 = vmatpush1.msra.mxu0 %v349
        %648 = vmatprep.subr.mxu0 0.0
        %649 = vmatpush1.msra.mxu0 %v348
        %650 = vmatprep.subr.mxu0 0.0
        %651 = vmatpush2.msra.mxu0 0.0
        %652 = vmatprep.subr.mxu0 0.0
        %653 = vmatpush2.msra.mxu0 0.0
        %654 = vmatprep.subr.mxu0 0.0
        %655 = vmatpush2.msra.mxu0 0.0
        %656 = vmatprep.subr.mxu0 0.0
        %657 = vmatpush2.msra.mxu0 0.0
        %658 = vmatprep.subr.mxu0 0.0
        %659 = vmatpush2.msra.mxu0 0.0
        %660 = vmatprep.subr.mxu0 0.0
        %661 = vmatpush2.msra.mxu0 0.0
        %662 = vmatprep.subr.mxu0 0.0
        %663 = vmatpush2.msra.mxu0 0.0
        %664 = vmatprep.subr.mxu0 0.0
        %665 = vmatpush2.msra.mxu0 0.0
        %666 = vmatprep.subr.mxu0 0.0
        %667 = vmatpush2.msra.mxu0 0.0
        %668 = vmatprep.subr.mxu0 0.0
        %669 = vmatpush2.msra.mxu0 0.0
        %670 = vmatprep.subr.mxu0 0.0
        %671 = vmatpush2.msra.mxu0 0.0
        %672 = vmatprep.subr.mxu0 0.0
        %673 = vmatpush2.msra.mxu0 0.0
        %674 = vmatprep.subr.mxu0 0.0
        %675 = vmatpush2.msra.mxu0 0.0
        %676 = vmatprep.subr.mxu0 0.0
        %677 = vmatpush2.msra.mxu0 0.0
        %678 = vmatprep.subr.mxu0 0.0
        %679 = vmatpush2.msra.mxu0 0.0
        %680 = vmatprep.subr.mxu0 0.0
        %681 = vmatpush2.msra.mxu0 0.0
        %682 = vmatprep.mubr.f32.mxu0 0.0
        %683 = vmatmul.mubr.f32.gmra.mxu0 %v616
        %v684 = vpop.f32.mrf.mxu0
        %v685 = vadd.f32 0.0, %v684
        %v686 = vpop.f32.mrf.mxu0
        %687 = vdwg.mxu0
        %v688 = vadd.f32 %v433, %v685
        %v690 = vsel %vm362, %v612, 0
        %692 = vmatprep.subr.mxu0 0.0
        %693 = vmatpush1.msra.mxu0 0.0
        %694 = vmatprep.subr.mxu0 0.0
        %695 = vmatpush1.msra.mxu0 0.0
        %696 = vmatprep.subr.mxu0 0.0
        %697 = vmatpush1.msra.mxu0 0.0
        %698 = vmatprep.subr.mxu0 0.0
        %699 = vmatpush1.msra.mxu0 0.0
        %700 = vmatprep.subr.mxu0 0.0
        %701 = vmatpush1.msra.mxu0 0.0
        %702 = vmatprep.subr.mxu0 0.0
        %703 = vmatpush1.msra.mxu0 0.0
        %704 = vmatprep.subr.mxu0 0.0
        %705 = vmatpush1.msra.mxu0 0.0
        %706 = vmatprep.subr.mxu0 0.0
        %707 = vmatpush1.msra.mxu0 0.0
        %708 = vmatprep.subr.mxu0 0.0
        %709 = vmatpush1.msra.mxu0 0.0
        %710 = vmatprep.subr.mxu0 0.0
        %711 = vmatpush1.msra.mxu0 0.0
        %712 = vmatprep.subr.mxu0 0.0
        %713 = vmatpush1.msra.mxu0 0.0
        %714 = vmatprep.subr.mxu0 0.0
        %715 = vmatpush1.msra.mxu0 0.0
        %716 = vmatprep.subr.mxu0 0.0
        %717 = vmatpush1.msra.mxu0 0.0
        %718 = vmatprep.subr.mxu0 0.0
        %719 = vmatpush1.msra.mxu0 0.0
        %720 = vmatprep.subr.mxu0 0.0
        %721 = vmatpush1.msra.mxu0 %v351
        %722 = vmatprep.subr.mxu0 0.0
        %723 = vmatpush1.msra.mxu0 %v350
        %724 = vmatprep.subr.mxu0 0.0
        %725 = vmatpush2.msra.mxu0 0.0
        %726 = vmatprep.subr.mxu0 0.0
        %727 = vmatpush2.msra.mxu0 0.0
        %728 = vmatprep.subr.mxu0 0.0
        %729 = vmatpush2.msra.mxu0 0.0
        %730 = vmatprep.subr.mxu0 0.0
        %731 = vmatpush2.msra.mxu0 0.0
        %732 = vmatprep.subr.mxu0 0.0
        %733 = vmatpush2.msra.mxu0 0.0
        %734 = vmatprep.subr.mxu0 0.0
        %735 = vmatpush2.msra.mxu0 0.0
        %736 = vmatprep.subr.mxu0 0.0
        %737 = vmatpush2.msra.mxu0 0.0
        %738 = vmatprep.subr.mxu0 0.0
        %739 = vmatpush2.msra.mxu0 0.0
        %740 = vmatprep.subr.mxu0 0.0
        %741 = vmatpush2.msra.mxu0 0.0
        %742 = vmatprep.subr.mxu0 0.0
        %743 = vmatpush2.msra.mxu0 0.0
        %744 = vmatprep.subr.mxu0 0.0
        %745 = vmatpush2.msra.mxu0 0.0
        %746 = vmatprep.subr.mxu0 0.0
        %747 = vmatpush2.msra.mxu0 0.0
        %748 = vmatprep.subr.mxu0 0.0
        %749 = vmatpush2.msra.mxu0 0.0
        %750 = vmatprep.subr.mxu0 0.0
        %751 = vmatpush2.msra.mxu0 0.0
        %752 = vmatprep.subr.mxu0 0.0
        %753 = vmatpush2.msra.mxu0 0.0
        %754 = vmatprep.subr.mxu0 0.0
        %755 = vmatpush2.msra.mxu0 0.0
        %756 = vmatprep.mubr.f32.mxu0 0.0
        %757 = vmatmul.mubr.f32.gmra.mxu0 %v690
        %v758 = vpop.f32.mrf.mxu0
        %v759 = vadd.f32 0.0, %v758
        %v760 = vpop.f32.mrf.mxu0
        %761 = vdwg.mxu0
        %v762 = vadd.f32 %v688, %v759
        %vm763 = vcmp.gt.f32.partialorder %v762, 0.0
        %v764 = vmul.f32 %v762, 0.01
        %v765 = vsel %vm763, %v762, %v764
        %766 = vst [vmem:[%s346] sm:$0xff] %v765
        %s767 = sand.u32 %s171, 1
        %s768 = scalar_lea.sflag [#allocation4], %s767
        %s769 = sand.u32 %s171, 1
        %s770 = smul.addr %s769, 8
        %s771 = scalar_lea.vmem [#allocation11], %s770
        // Predicated region
        $region65: #{tpu_custom_call.1} parent=43 // pred_check
          %p772 = pneg %p181
        $region66: #{tpu_custom_call.1} parent=43 // pred_check_branch
          %774 = sbr.rel (%p772) target = $region68
        $region67: #{tpu_custom_call.1} parent=43 // pred_region
          %s776 = ssub.s32 128, 128
          %777 = vsyncadd %s768, %s776
          %s778 = smul.addr %s27, 128
          %s779 = scalar_lea.hbm %s6, %s778
          %s781 = sshll.u32 %s771, 4
          %s782 = int_to_ptr.vmem [resolvable:$true] %s781
          %784 = dma.vmem_to_hbm [thread:$0]  %s782, 128, %s779, %s768
        $region68: #{tpu_custom_call.1} parent=43 // pred_fallthru
          _
      $region44: #{tpu_custom_call.1} parent=5 // pred_fallthru
        _
      %p785 = scmp.le.s32.totalorder 2, %s22
      // Predicated region
      $region69: #{tpu_custom_call.1} parent=5 // pred_check
        %p786 = pneg %p785
      $region70: #{tpu_custom_call.1} parent=5 // pred_check_branch
        %788 = sbr.rel (%p786) target = $region72
      $region71: #{tpu_custom_call.1} parent=5 // pred_region
        %s789 = ssub.s32 %s22, 2
        // Predicated region
        $region73: #{tpu_custom_call.1} parent=71 // pred_check
          %p790 = pneg %p187
        $region74: #{tpu_custom_call.1} parent=71 // pred_check_branch
          %792 = sbr.rel (%p790) target = $region76
        $region75: #{tpu_custom_call.1} parent=71 // pred_region
          %s793 = sand.u32 %s172, 1
          %s794 = scalar_lea.sflag [#allocation4], %s793
          %s795 = sand.u32 %s172, 1
          %s796 = smul.addr %s795, 8
          %s797 = scalar_lea.vmem [#allocation11], %s796
          %798 = dma.done %s794, 128
        $region76: #{tpu_custom_call.1} parent=71 // pred_fallthru
          _
      $region72: #{tpu_custom_call.1} parent=5 // pred_fallthru
        _
    $region6: #{tpu_custom_call.1} parent=1 // loop_footer
      %s26 = sadd.s32 1, %s22
    $region7: #{tpu_custom_call.1} parent=1 // loop_footer_branch
      %21 = sbr.rel target = $region3
    $region8: #{tpu_custom_call.1} parent=1 // loop_exit
      _
    %799 = vsyncpa [#allocation3], 1
    %s800 = scalar_lea.sflag [#allocation3], 1
    %801 = vsyncpa %s800, 1
    %802 = vsyncpa [#allocation6], 1
    %s803 = scalar_lea.sflag [#allocation6], 1
    %804 = vsyncpa %s803, 1
    %805 = vsyncpa [#allocation9], 1
    %806 = vsyncpa [#allocation4], 1
    %s807 = scalar_lea.sflag [#allocation4], 1
    %808 = vsyncpa %s807, 1

</llo_original>
